<compile_context>
chip_gen: v7x
topology: tpu7x:2x2x1
jax: 0.10.0
libtpu: 0.0.40
codegen_flags: <defaults>
</compile_context>

<pallas_src>
import functools

import jax
import jax.numpy as jnp
import numpy as np
from jax.experimental import pallas as pl
from jax.experimental.pallas import tpu as pltpu


def _round_up(x, m):
    return (x + m - 1) // m * m


# ----------------------------------------------------------------------------
# Kernel: grid = (row tiles, K tiles over the intermediate dim)
#   acc   += hidden[i, k] @ W[k]                      (MXU, f32 accumulation)
#   out[i] = LayerNorm(acc + bias + residual[i])      (epilogue at last k)
# ----------------------------------------------------------------------------
def bert_output_kernel(h_ref, x_ref, w_ref, p_ref, o_ref, acc_ref, *, eps):
    k = pl.program_id(1)

    @pl.when(k == 0)
    def _init():
        acc_ref[...] = jnp.zeros_like(acc_ref)

    # bf16 x bf16 -> f32 on the MXU.
    acc_ref[...] += jnp.dot(h_ref[...], w_ref[...],
                            preferred_element_type=jnp.float32)

    @pl.when(k == pl.num_programs(1) - 1)
    def _epilogue():
        bias = p_ref[0:1, :]      # (1, H) f32
        gamma = p_ref[1:2, :]
        beta = p_ref[2:3, :]

        # bias + residual (f32 elementwise)
        y = acc_ref[...] + bias + x_ref[...].astype(jnp.float32)
        # TODO(synk): hidden dropout omitted (eval-mode identity).

        # BertLayerNorm: biased variance, eps inside the sqrt.
        mean = jnp.mean(y, axis=-1, keepdims=True)
        cent = y - mean
        var = jnp.mean(cent * cent, axis=-1, keepdims=True)
        inv_std = jax.lax.rsqrt(var + eps)              # EUP rsqrt, no VPU divide
        o_ref[...] = (gamma * (cent * inv_std) + beta).astype(o_ref.dtype)


# ----------------------------------------------------------------------------
# Wrapper
# ----------------------------------------------------------------------------
def bert_output(hidden_states, input_tensor, w, b, gamma, beta, *,
                eps=1e-12, block_rows=256, block_k=1024, out_dtype=None,
                compute_dtype=jnp.bfloat16):
    """hidden_states: (B, S, I); input_tensor: (B, S, H); w: (I, H) = Linear.weight.T"""
    B, S, I = hidden_states.shape
    H = input_tensor.shape[-1]
    rows = B * S
    out_dtype = hidden_states.dtype if out_dtype is None else out_dtype

    # Row tiling: big tiles fill the MXU M-dim (128 on v5e, 256 on v6e/v7x);
    # small inputs shrink the tile instead of padding 16 rows up to 256.
    tr = min(block_rows, _round_up(rows, 8))
    rows_p = _round_up(rows, tr)

    # K tiling over the intermediate dim (reduction axis last in the grid).
    tk = block_k if I % block_k == 0 else I
    # TODO(synk): pad I when intermediate_size is not a multiple of block_k.

    # Lane-dense 2-D views of the token stream, DMA'd in bf16.
    h2 = hidden_states.reshape(rows, I).astype(compute_dtype)
    x2 = input_tensor.reshape(rows, H).astype(compute_dtype)
    if rows_p != rows:
        h2 = jnp.pad(h2, ((0, rows_p - rows), (0, 0)))
        x2 = jnp.pad(x2, ((0, rows_p - rows), (0, 0)))

    w_c = w.astype(compute_dtype)                       # (I, H) bf16

    # Pack bias / gamma / beta into one (8, H) f32 operand (rows 0..2 used).
    params = jnp.zeros((8, H), jnp.float32)
    params = params.at[0].set(b.reshape(H).astype(jnp.float32))
    params = params.at[1].set(gamma.reshape(H).astype(jnp.float32))
    params = params.at[2].set(beta.reshape(H).astype(jnp.float32))

    grid = (rows_p // tr, I // tk)

    act_bytes = jnp.dtype(compute_dtype).itemsize
    out_bytes = jnp.dtype(jnp.dtype(out_dtype)).itemsize
    vmem_needed = (2 * tr * tk * act_bytes      # hidden tiles (double-buffered)
                   + 2 * tr * H * act_bytes     # residual tiles
                   + 2 * tk * H * act_bytes     # weight tiles
                   + 2 * 8 * H * 4              # packed params
                   + 2 * tr * H * out_bytes     # output tiles
                   + tr * H * 4)                # f32 accumulator scratch
    vmem_limit = int(min(max(vmem_needed + (4 << 20), 16 << 20), 64 << 20))

    cost = pl.CostEstimate(
        flops=2 * rows_p * I * H + 8 * rows_p * H,
        transcendentals=rows_p,
        bytes_accessed=((h2.size + x2.size + w_c.size) * act_bytes
                        + params.size * 4 + rows_p * H * out_bytes),
    )

    out2 = pl.pallas_call(
        functools.partial(bert_output_kernel, eps=eps),
        out_shape=jax.ShapeDtypeStruct((rows_p, H), out_dtype),
        grid_spec=pltpu.PrefetchScalarGridSpec(
            num_scalar_prefetch=0,
            grid=grid,
            in_specs=[
                pl.BlockSpec((tr, tk), lambda i, k: (i, k)),   # hidden_states tile
                pl.BlockSpec((tr, H), lambda i, k: (i, 0)),    # residual tile
                pl.BlockSpec((tk, H), lambda i, k: (k, 0)),    # dense weight slab
                pl.BlockSpec((8, H), lambda i, k: (0, 0)),     # packed bias/gamma/beta
            ],
            out_specs=pl.BlockSpec((tr, H), lambda i, k: (i, 0)),
            scratch_shapes=[pltpu.VMEM((tr, H), jnp.float32)],
        ),
        compiler_params=pltpu.CompilerParams(
            dimension_semantics=("parallel", "arbitrary"),
            vmem_limit_bytes=vmem_limit,
        ),
        cost_estimate=cost,
    )(h2, x2, w_c, params)

    if rows_p != rows:
        out2 = out2[:rows]
    return out2.reshape(B, S, H)


# ----------------------------------------------------------------------------
# Pure-numpy reference (float64)
# ----------------------------------------------------------------------------
def bert_output_ref(h, x, w, b, g, beta, eps=1e-12):
    y = h @ w + b                       # dense
    y = y + x                           # dropout (identity) + residual
    mean = y.mean(-1, keepdims=True)
    var = ((y - mean) ** 2).mean(-1, keepdims=True)
    return g * (y - mean) / np.sqrt(var + eps) + beta


# ----------------------------------------------------------------------------
# Main
# ----------------------------------------------------------------------------
if __name__ == "__main__":
    # Small but TPU-shaped: hidden a multiple of 128, intermediate = 4 * hidden.
    B, S, HID, INTER = 2, 8, 128, 512

    key = jax.random.PRNGKey(0)
    k1, k2, k3, k4, k5, k6 = jax.random.split(key, 6)

    hidden_states = jax.random.normal(k1, (B, S, INTER), dtype=jnp.float32)
    input_tensor = jax.random.normal(k2, (B, S, HID), dtype=jnp.float32)
    w = 0.05 * jax.random.normal(k3, (INTER, HID), dtype=jnp.float32)  # = Linear.weight.T
    b = 0.05 * jax.random.normal(k4, (HID,), dtype=jnp.float32)
    gamma = 1.0 + 0.1 * jax.random.normal(k5, (HID,), dtype=jnp.float32)
    beta = 0.1 * jax.random.normal(k6, (HID,), dtype=jnp.float32)

    out = bert_output(hidden_states, input_tensor, w, b, gamma, beta)
    out = jax.block_until_ready(out)

    ref = bert_output_ref(
        np.asarray(hidden_states, np.float64).reshape(B * S, INTER),
        np.asarray(input_tensor, np.float64).reshape(B * S, HID),
        np.asarray(w, np.float64), np.asarray(b, np.float64),
        np.asarray(gamma, np.float64), np.asarray(beta, np.float64),
    ).reshape(B, S, HID)

    # Tolerance reflects the intentional bf16 MXU / bf16-activation trade-off.
    np.testing.assert_allclose(np.asarray(out, np.float64), ref, rtol=2e-2, atol=3e-2)
    print("KERNEL_OK")
</pallas_src>

<mosaic_0001>
module attributes {stable_mosaic.version = 11 : i64} {
  func.func @bert_output_kernel(%arg0: i32, %arg1: i32, %arg2: memref<16x512xbf16, #tpu.memory_space<vmem>>, %arg3: memref<16x128xbf16, #tpu.memory_space<vmem>>, %arg4: memref<512x128xbf16, #tpu.memory_space<vmem>>, %arg5: memref<8x128xf32, #tpu.memory_space<vmem>>, %arg6: memref<16x128xf32, #tpu.memory_space<vmem>>, %arg7: memref<16x128xf32, #tpu.memory_space<vmem>>) attributes {dimension_semantics = [#tpu.dimension_semantics<parallel>, #tpu.dimension_semantics<arbitrary>], iteration_bounds = array<i64: 1, 1>, scalar_prefetch = 0 : i64, scratch_operands = 1 : i64, tpu.core_type = #tpu.core_type<tc>, window_params = [{transform_indices = @transform_0, window_bounds = array<i64: 16, 512>}, {transform_indices = @transform_1, window_bounds = array<i64: 16, 128>}, {transform_indices = @transform_2, window_bounds = array<i64: 512, 128>}, {pipeline_mode = #tpu.pipeline_mode<synchronous>, transform_indices = @transform_3, window_bounds = array<i64: 8, 128>}, {transform_indices = @transform_4, window_bounds = array<i64: 16, 128>}]} {
    %c0_i32 = arith.constant 0 : i32
    %0 = arith.cmpi eq, %arg1, %c0_i32 : i32
    %1 = arith.extui %0 : i1 to i32
    %c0_i32_0 = arith.constant 0 : i32
    %2 = arith.cmpi ne, %1, %c0_i32_0 : i32
    scf.if %2 {
      %cst_10 = arith.constant 0.000000e+00 : f32
      %12 = vector.broadcast %cst_10 : f32 to vector<16x128xf32>
      %c0_11 = arith.constant 0 : index
      %c0_12 = arith.constant 0 : index
      %13 = vector.load %arg7[%c0_11, %c0_12] : memref<16x128xf32, #tpu.memory_space<vmem>>, vector<16x128xf32>
      tpu.vector_store %arg7[%c0_11, %c0_12], %12 {strides = array<i32>} : memref<16x128xf32, #tpu.memory_space<vmem>>, vector<16x128xf32>,
    } else {
    }
    %c0 = arith.constant 0 : index
    %c0_1 = arith.constant 0 : index
    %3 = vector.load %arg7[%c0, %c0_1] : memref<16x128xf32, #tpu.memory_space<vmem>>, vector<16x128xf32>
    %c0_2 = arith.constant 0 : index
    %c0_3 = arith.constant 0 : index
    %4 = vector.load %arg2[%c0_2, %c0_3] : memref<16x512xbf16, #tpu.memory_space<vmem>>, vector<16x512xbf16>
    %c0_4 = arith.constant 0 : index
    %c0_5 = arith.constant 0 : index
    %5 = vector.load %arg4[%c0_4, %c0_5] : memref<512x128xbf16, #tpu.memory_space<vmem>>, vector<512x128xbf16>
    %cst = arith.constant dense<0.000000e+00> : vector<16x128xf32>
    %6 = tpu.matmul %4, %5, %cst {dimension_numbers = #tpu.dot_dimension_numbers<[1], [0], [0], [1], [0, 0, 1, 1], [], []>} : vector<16x512xbf16>, vector<512x128xbf16>, vector<16x128xf32> -> vector<16x128xf32>
    %7 = arith.addf %3, %6 : vector<16x128xf32>
    %c0_6 = arith.constant 0 : index
    %c0_7 = arith.constant 0 : index
    %8 = vector.load %arg7[%c0_6, %c0_7] : memref<16x128xf32, #tpu.memory_space<vmem>>, vector<16x128xf32>
    tpu.vector_store %arg7[%c0_6, %c0_7], %7 {strides = array<i32>} : memref<16x128xf32, #tpu.memory_space<vmem>>, vector<16x128xf32>,
    %c0_i32_8 = arith.constant 0 : i32
    %9 = arith.cmpi eq, %arg1, %c0_i32_8 : i32
    %10 = arith.extui %9 : i1 to i32
    %c0_i32_9 = arith.constant 0 : i32
    %11 = arith.cmpi ne, %10, %c0_i32_9 : i32
    scf.if %11 {
      %c0_10 = arith.constant 0 : index
      %c0_11 = arith.constant 0 : index
      %12 = vector.load %arg5[%c0_10, %c0_11] : memref<8x128xf32, #tpu.memory_space<vmem>>, vector<1x128xf32>
      %c1 = arith.constant 1 : index
      %c0_12 = arith.constant 0 : index
      %13 = vector.load %arg5[%c1, %c0_12] : memref<8x128xf32, #tpu.memory_space<vmem>>, vector<1x128xf32>
      %c2 = arith.constant 2 : index
      %c0_13 = arith.constant 0 : index
      %14 = vector.load %arg5[%c2, %c0_13] : memref<8x128xf32, #tpu.memory_space<vmem>>, vector<1x128xf32>
      %c0_14 = arith.constant 0 : index
      %c0_15 = arith.constant 0 : index
      %15 = vector.load %arg7[%c0_14, %c0_15] : memref<16x128xf32, #tpu.memory_space<vmem>>, vector<16x128xf32>
      %16 = vector.broadcast %12 : vector<1x128xf32> to vector<16x128xf32>
      %17 = arith.addf %15, %16 : vector<16x128xf32>
      %c0_16 = arith.constant 0 : index
      %c0_17 = arith.constant 0 : index
      %18 = vector.load %arg3[%c0_16, %c0_17] : memref<16x128xbf16, #tpu.memory_space<vmem>>, vector<16x128xbf16>
      %19 = arith.extf %18 : vector<16x128xbf16> to vector<16x128xf32>
      %20 = arith.addf %17, %19 : vector<16x128xf32>
      %cst_18 = arith.constant dense<0.000000e+00> : vector<16xf32>
      %21 = vector.multi_reduction <add>, %20, %cst_18 [1] : vector<16x128xf32> to vector<16xf32>
      %22 = vector.shape_cast %21 : vector<16xf32> to vector<16x1xf32>
      %cst_19 = arith.constant 1.280000e+02 : f32
      %23 = vector.broadcast %cst_19 : f32 to vector<16x1xf32>
      %24 = arith.divf %22, %23 : vector<16x1xf32>
      %25 = vector.broadcast %24 : vector<16x1xf32> to vector<16x128xf32>
      %26 = arith.subf %20, %25 : vector<16x128xf32>
      %27 = arith.mulf %26, %26 : vector<16x128xf32>
      %cst_20 = arith.constant dense<0.000000e+00> : vector<16xf32>
      %28 = vector.multi_reduction <add>, %27, %cst_20 [1] : vector<16x128xf32> to vector<16xf32>
      %29 = vector.shape_cast %28 : vector<16xf32> to vector<16x1xf32>
      %cst_21 = arith.constant 1.280000e+02 : f32
      %30 = vector.broadcast %cst_21 : f32 to vector<16x1xf32>
      %31 = arith.divf %29, %30 : vector<16x1xf32>
      %cst_22 = arith.constant 9.99999996E-13 : f32
      %32 = vector.broadcast %cst_22 : f32 to vector<16x1xf32>
      %33 = arith.addf %31, %32 : vector<16x1xf32>
      %34 = math.rsqrt %33 : vector<16x1xf32>
      %35 = vector.broadcast %34 : vector<16x1xf32> to vector<16x128xf32>
      %36 = arith.mulf %26, %35 : vector<16x128xf32>
      %37 = vector.broadcast %13 : vector<1x128xf32> to vector<16x128xf32>
      %38 = arith.mulf %37, %36 : vector<16x128xf32>
      %39 = vector.broadcast %14 : vector<1x128xf32> to vector<16x128xf32>
      %40 = arith.addf %38, %39 : vector<16x128xf32>
      %c0_23 = arith.constant 0 : index
      %c0_24 = arith.constant 0 : index
      %41 = vector.load %arg6[%c0_23, %c0_24] : memref<16x128xf32, #tpu.memory_space<vmem>>, vector<16x128xf32>
      tpu.vector_store %arg6[%c0_23, %c0_24], %40 {strides = array<i32>} : memref<16x128xf32, #tpu.memory_space<vmem>>, vector<16x128xf32>,
    } else {
    }
    return
  }
  func.func @transform_0(%arg0: i32, %arg1: i32) -> (i32, i32) {
    %c0_i32 = arith.constant 0 : i32
    return %arg0, %arg1 : i32, i32
  }
  func.func @transform_1(%arg0: i32, %arg1: i32) -> (i32, i32) {
    %c0_i32 = arith.constant 0 : i32
    %c0_i32_0 = arith.constant 0 : i32
    return %arg0, %c0_i32 : i32, i32
  }
  func.func @transform_2(%arg0: i32, %arg1: i32) -> (i32, i32) {
    %c0_i32 = arith.constant 0 : i32
    %c0_i32_0 = arith.constant 0 : i32
    return %arg1, %c0_i32 : i32, i32
  }
  func.func @transform_3(%arg0: i32, %arg1: i32) -> (i32, i32) {
    %c0_i32 = arith.constant 0 : i32
    %c0_i32_0 = arith.constant 0 : i32
    %c0_i32_1 = arith.constant 0 : i32
    return %c0_i32, %c0_i32_0 : i32, i32
  }
  func.func @transform_4(%arg0: i32, %arg1: i32) -> (i32, i32) {
    %c0_i32 = arith.constant 0 : i32
    %c0_i32_0 = arith.constant 0 : i32
    return %arg0, %c0_i32 : i32, i32
  }
}

</mosaic_0001>

<llo_original>
// kernel: tpu_custom_call.1
$region0: #{tpu_custom_call.1}
  #allocation0 [shape = 'u32[]', space=smem, size = 0x4, offset = 0x4, fixed_abs, tag = 'smem constant byte address 0x4 - core index']
  #allocation1 [shape = 'u32[144,128]{1,0:T(1,128)}', space=vmem, size = 0x12000, scoped, tag = 'internal scratch']
  #allocation2 [shape = 'f32[16,128]{1,0:T(8,128)}', space=vmem, size = 0x2000, scoped, tag = 'scratch operand']
  %s0 = inlined_call_operand.hbm [shape: bf16[16,512], index: 0, kind: input, shape index: {}]
  %s1 = inlined_call_operand.hbm [shape: bf16[16,128], index: 1, kind: input, shape index: {}]
  %s2 = inlined_call_operand.hbm [shape: bf16[512,128], index: 2, kind: input, shape index: {}]
  %s3 = inlined_call_operand.vmem [shape: f32[8,128], index: 3, kind: input, shape index: {}]
  %s4 = inlined_call_operand.hbm [shape: f32[16,128], index: 4, kind: output, shape index: {}]
  %s5 = sld [smem:[#allocation0]]
  $region46: #{tpu_custom_call.1} parent=0
    _
  %s7 = ssub.s32 1, %s5
  %s8 = scalar_select 0, %s7, %s5
  $region1: #{tpu_custom_call.1} parent=0
    #allocation3 [shape = 'u8[16384]{0}', space=vmem, size = 0x4000, scoped, tag = 'input window, operand 0, single buffered']
    #allocation4 [shape = 's32[1]{0}', space=sflag, size = 0x4, scoped, tag = 'scoped memory for tpu_custom_call.1']
    #allocation5 [shape = 's32[1]{0}', space=sflag, size = 0x4, scoped, tag = 'scoped memory for tpu_custom_call.1']
    #allocation6 [shape = 'u8[4096]{0}', space=vmem, size = 0x1000, scoped, tag = 'input window, operand 1, single buffered']
    #allocation7 [shape = 's32[1]{0}', space=sflag, size = 0x4, scoped, tag = 'scoped memory for tpu_custom_call.1']
    #allocation8 [shape = 'u8[131072]{0}', space=vmem, size = 0x20000, scoped, tag = 'input window, operand 2, single buffered']
    #allocation9 [shape = 'u8[8192]{0}', space=vmem, size = 0x2000, scoped, tag = 'output window, operand 0, single buffered']
    %9 = vsyncpa [#allocation4], 0
    %10 = vsyncpa [#allocation7], 0
    %11 = vsyncpa [#allocation5], 0
    // Predicated region
    $region2: #{tpu_custom_call.1} parent=1 // pred_check
      _
    $region3: #{tpu_custom_call.1} parent=1 // pred_check_branch
      %13 = sbr.rel (0) target = $region5
    $region4: #{tpu_custom_call.1} parent=1 // pred_region
      %s15 = ssub.s32 512, 512
      %16 = vsyncadd [#allocation4], %s15
      %s17 = sshll.u32 [#allocation3], 4
      %s18 = int_to_ptr.vmem [resolvable:$true] %s17
      %23 = dma.hbm_to_vmem [thread:$0]  %s0, 512, %s18, [#allocation4], 256, 256, 16
    $region5: #{tpu_custom_call.1} parent=1 // pred_fallthru
      _
    // Predicated region
    $region6: #{tpu_custom_call.1} parent=1 // pred_check
      _
    $region7: #{tpu_custom_call.1} parent=1 // pred_check_branch
      %25 = sbr.rel (0) target = $region9
    $region8: #{tpu_custom_call.1} parent=1 // pred_region
      %s27 = ssub.s32 128, 128
      %28 = vsyncadd [#allocation7], %s27
      %s29 = sshll.u32 [#allocation6], 4
      %s30 = int_to_ptr.vmem [resolvable:$true] %s29
      %35 = dma.hbm_to_vmem [thread:$0]  %s1, 128, %s30, [#allocation7], 64, 64, 4
    $region9: #{tpu_custom_call.1} parent=1 // pred_fallthru
      _
    // Predicated region
    $region10: #{tpu_custom_call.1} parent=1 // pred_check
      _
    $region11: #{tpu_custom_call.1} parent=1 // pred_check_branch
      %37 = sbr.rel (0) target = $region13
    $region12: #{tpu_custom_call.1} parent=1 // pred_region
      %s39 = ssub.s32 4096, 4096
      %40 = vsyncadd [#allocation7], %s39
      %s41 = sshll.u32 [#allocation8], 4
      %s42 = int_to_ptr.vmem [resolvable:$true] %s41
      %47 = dma.hbm_to_vmem [thread:$0]  %s2, 4096, %s42, [#allocation7], 64, 64, 4
    $region13: #{tpu_custom_call.1} parent=1 // pred_fallthru
      _
    // Predicated region
    $region14: #{tpu_custom_call.1} parent=1 // pred_check
      _
    $region15: #{tpu_custom_call.1} parent=1 // pred_check_branch
      %49 = sbr.rel (0) target = $region17
    $region16: #{tpu_custom_call.1} parent=1 // pred_region
      _
    $region17: #{tpu_custom_call.1} parent=1 // pred_fallthru
      _
    // Predicated region
    $region18: #{tpu_custom_call.1} parent=1 // pred_check
      _
    $region19: #{tpu_custom_call.1} parent=1 // pred_check_branch
      %51 = sbr.rel (0) target = $region21
    $region20: #{tpu_custom_call.1} parent=1 // pred_region
      %52 = dma.done [#allocation4], 512
    $region21: #{tpu_custom_call.1} parent=1 // pred_fallthru
      _
    // Predicated region
    $region22: #{tpu_custom_call.1} parent=1 // pred_check
      _
    $region23: #{tpu_custom_call.1} parent=1 // pred_check_branch
      %54 = sbr.rel (0) target = $region25
    $region24: #{tpu_custom_call.1} parent=1 // pred_region
      %55 = dma.done [#allocation7], 128
    $region25: #{tpu_custom_call.1} parent=1 // pred_fallthru
      _
    // Predicated region
    $region26: #{tpu_custom_call.1} parent=1 // pred_check
      _
    $region27: #{tpu_custom_call.1} parent=1 // pred_check_branch
      %57 = sbr.rel (0) target = $region29
    $region28: #{tpu_custom_call.1} parent=1 // pred_region
      %58 = dma.done [#allocation7], 4096
    $region29: #{tpu_custom_call.1} parent=1 // pred_fallthru
      _
    %p60 = scmp.eq.s32.totalorder 0, 0
    // Predicated region
    $region30: #{tpu_custom_call.1} parent=1 // pred_check
      %p61 = pneg %p60
    $region31: #{tpu_custom_call.1} parent=1 // pred_check_branch
      %63 = sbr.rel (%p61) target = $region33
    $region32: #{tpu_custom_call.1} parent=1 // pred_region
      %64 = vst [vmem:[#allocation2] sm:$0xff] 0.0
      %65 = vst [vmem:[#allocation2 + $0x8] sm:$0xff] 0.0
    $region33: #{tpu_custom_call.1} parent=1 // pred_fallthru
      _
    %v66 = vld [vmem:[#allocation2] sm:$0xff]
    %v67 = vld [vmem:[#allocation2 + $0x8] sm:$0xff]
    %v68 = vld [vmem:[#allocation3] sm:$0xff]
    %v69 = vld [vmem:[#allocation3 + $0x8] sm:$0xff]
    %v70 = vld [vmem:[#allocation3 + $0x10] sm:$0xff]
    %v71 = vld [vmem:[#allocation3 + $0x18] sm:$0xff]
    %v72 = vld [vmem:[#allocation8] sm:$0xf]
    %v73 = vld [vmem:[#allocation8 + $0x4] sm:$0xf]
    %v74 = vld [vmem:[#allocation8 + $0x8] sm:$0xf]
    %v75 = vld [vmem:[#allocation8 + $0xc] sm:$0xf]
    %v76 = vld [vmem:[#allocation8 + $0x10] sm:$0xf]
    %v77 = vld [vmem:[#allocation8 + $0x14] sm:$0xf]
    %v78 = vld [vmem:[#allocation8 + $0x18] sm:$0xf]
    %v79 = vld [vmem:[#allocation8 + $0x1c] sm:$0xf]
    %v80 = vld [vmem:[#allocation8 + $0x20] sm:$0xf]
    %v81 = vld [vmem:[#allocation8 + $0x24] sm:$0xf]
    %v82 = vld [vmem:[#allocation8 + $0x28] sm:$0xf]
    %v83 = vld [vmem:[#allocation8 + $0x2c] sm:$0xf]
    %v84 = vld [vmem:[#allocation8 + $0x30] sm:$0xf]
    %v85 = vld [vmem:[#allocation8 + $0x34] sm:$0xf]
    %v86 = vld [vmem:[#allocation8 + $0x38] sm:$0xf]
    %v87 = vld [vmem:[#allocation8 + $0x3c] sm:$0xf]
    %v88 = vld [vmem:[#allocation8 + $0x40] sm:$0xf]
    %v89 = vld [vmem:[#allocation8 + $0x44] sm:$0xf]
    %v90 = vld [vmem:[#allocation8 + $0x48] sm:$0xf]
    %v91 = vld [vmem:[#allocation8 + $0x4c] sm:$0xf]
    %v92 = vld [vmem:[#allocation8 + $0x50] sm:$0xf]
    %v93 = vld [vmem:[#allocation8 + $0x54] sm:$0xf]
    %v94 = vld [vmem:[#allocation8 + $0x58] sm:$0xf]
    %v95 = vld [vmem:[#allocation8 + $0x5c] sm:$0xf]
    %v96 = vld [vmem:[#allocation8 + $0x60] sm:$0xf]
    %v97 = vld [vmem:[#allocation8 + $0x64] sm:$0xf]
    %v98 = vld [vmem:[#allocation8 + $0x68] sm:$0xf]
    %v99 = vld [vmem:[#allocation8 + $0x6c] sm:$0xf]
    %v100 = vld [vmem:[#allocation8 + $0x70] sm:$0xf]
    %v101 = vld [vmem:[#allocation8 + $0x74] sm:$0xf]
    %v102 = vld [vmem:[#allocation8 + $0x78] sm:$0xf]
    %v103 = vld [vmem:[#allocation8 + $0x7c] sm:$0xf]
    %v104 = vld [vmem:[#allocation8 + $0x80] sm:$0xf]
    %v105 = vld [vmem:[#allocation8 + $0x84] sm:$0xf]
    %v106 = vld [vmem:[#allocation8 + $0x88] sm:$0xf]
    %v107 = vld [vmem:[#allocation8 + $0x8c] sm:$0xf]
    %v108 = vld [vmem:[#allocation8 + $0x90] sm:$0xf]
    %v109 = vld [vmem:[#allocation8 + $0x94] sm:$0xf]
    %v110 = vld [vmem:[#allocation8 + $0x98] sm:$0xf]
    %v111 = vld [vmem:[#allocation8 + $0x9c] sm:$0xf]
    %v112 = vld [vmem:[#allocation8 + $0xa0] sm:$0xf]
    %v113 = vld [vmem:[#allocation8 + $0xa4] sm:$0xf]
    %v114 = vld [vmem:[#allocation8 + $0xa8] sm:$0xf]
    %v115 = vld [vmem:[#allocation8 + $0xac] sm:$0xf]
    %v116 = vld [vmem:[#allocation8 + $0xb0] sm:$0xf]
    %v117 = vld [vmem:[#allocation8 + $0xb4] sm:$0xf]
    %v118 = vld [vmem:[#allocation8 + $0xb8] sm:$0xf]
    %v119 = vld [vmem:[#allocation8 + $0xbc] sm:$0xf]
    %v120 = vld [vmem:[#allocation8 + $0xc0] sm:$0xf]
    %v121 = vld [vmem:[#allocation8 + $0xc4] sm:$0xf]
    %v122 = vld [vmem:[#allocation8 + $0xc8] sm:$0xf]
    %v123 = vld [vmem:[#allocation8 + $0xcc] sm:$0xf]
    %v124 = vld [vmem:[#allocation8 + $0xd0] sm:$0xf]
    %v125 = vld [vmem:[#allocation8 + $0xd4] sm:$0xf]
    %v126 = vld [vmem:[#allocation8 + $0xd8] sm:$0xf]
    %v127 = vld [vmem:[#allocation8 + $0xdc] sm:$0xf]
    %v128 = vld [vmem:[#allocation8 + $0xe0] sm:$0xf]
    %v129 = vld [vmem:[#allocation8 + $0xe4] sm:$0xf]
    %v130 = vld [vmem:[#allocation8 + $0xe8] sm:$0xf]
    %v131 = vld [vmem:[#allocation8 + $0xec] sm:$0xf]
    %v132 = vld [vmem:[#allocation8 + $0xf0] sm:$0xf]
    %v133 = vld [vmem:[#allocation8 + $0xf4] sm:$0xf]
    %v134 = vld [vmem:[#allocation8 + $0xf8] sm:$0xf]
    %v135 = vld [vmem:[#allocation8 + $0xfc] sm:$0xf]
    %v140 = vunpack.c.l.b16 %v68
    %v141 = vunpack.c.h.b16 %v68
    %v142 = vunpack.c.l.b16 %v69
    %v143 = vunpack.c.h.b16 %v69
    %v144 = vunpack.c.l.b16 %v70
    %v145 = vunpack.c.h.b16 %v70
    %v146 = vunpack.c.l.b16 %v71
    %v147 = vunpack.c.h.b16 %v71
    %v148 = vpack.c.b16 %v144, %v140
    %v149 = vpack.c.b16 %v145, %v141
    %v150 = vpack.c.b16 %v146, %v142
    %v151 = vpack.c.b16 %v147, %v143
    %v220 = vunpack.c.l.b16 %v72
    %v221 = vunpack.c.l.b16 %v73
    %v222 = vunpack.c.l.b16 %v74
    %v223 = vunpack.c.l.b16 %v75
    %v224 = vunpack.c.l.b16 %v76
    %v225 = vunpack.c.l.b16 %v77
    %v226 = vunpack.c.l.b16 %v78
    %v227 = vunpack.c.l.b16 %v79
    %v228 = vunpack.c.l.b16 %v80
    %v229 = vunpack.c.l.b16 %v81
    %v230 = vunpack.c.l.b16 %v82
    %v231 = vunpack.c.l.b16 %v83
    %v232 = vunpack.c.l.b16 %v84
    %v233 = vunpack.c.l.b16 %v85
    %v234 = vunpack.c.l.b16 %v86
    %v235 = vunpack.c.l.b16 %v87
    %v236 = vunpack.c.l.b16 %v88
    %v237 = vunpack.c.l.b16 %v89
    %v238 = vunpack.c.l.b16 %v90
    %v239 = vunpack.c.l.b16 %v91
    %v240 = vunpack.c.l.b16 %v92
    %v241 = vunpack.c.l.b16 %v93
    %v242 = vunpack.c.l.b16 %v94
    %v243 = vunpack.c.l.b16 %v95
    %v244 = vunpack.c.l.b16 %v96
    %v245 = vunpack.c.l.b16 %v97
    %v246 = vunpack.c.l.b16 %v98
    %v247 = vunpack.c.l.b16 %v99
    %v248 = vunpack.c.l.b16 %v100
    %v249 = vunpack.c.l.b16 %v101
    %v250 = vunpack.c.l.b16 %v102
    %v251 = vunpack.c.l.b16 %v103
    %v252 = vunpack.c.l.b16 %v104
    %v253 = vunpack.c.l.b16 %v105
    %v254 = vunpack.c.l.b16 %v106
    %v255 = vunpack.c.l.b16 %v107
    %v256 = vunpack.c.l.b16 %v108
    %v257 = vunpack.c.l.b16 %v109
    %v258 = vunpack.c.l.b16 %v110
    %v259 = vunpack.c.l.b16 %v111
    %v260 = vunpack.c.l.b16 %v112
    %v261 = vunpack.c.l.b16 %v113
    %v262 = vunpack.c.l.b16 %v114
    %v263 = vunpack.c.l.b16 %v115
    %v264 = vunpack.c.l.b16 %v116
    %v265 = vunpack.c.l.b16 %v117
    %v266 = vunpack.c.l.b16 %v118
    %v267 = vunpack.c.l.b16 %v119
    %v268 = vunpack.c.l.b16 %v120
    %v269 = vunpack.c.l.b16 %v121
    %v270 = vunpack.c.l.b16 %v122
    %v271 = vunpack.c.l.b16 %v123
    %v272 = vunpack.c.l.b16 %v124
    %v273 = vunpack.c.l.b16 %v125
    %v274 = vunpack.c.l.b16 %v126
    %v275 = vunpack.c.l.b16 %v127
    %v276 = vunpack.c.l.b16 %v128
    %v277 = vunpack.c.l.b16 %v129
    %v278 = vunpack.c.l.b16 %v130
    %v279 = vunpack.c.l.b16 %v131
    %v280 = vunpack.c.l.b16 %v132
    %v281 = vunpack.c.l.b16 %v133
    %v282 = vunpack.c.l.b16 %v134
    %v283 = vunpack.c.l.b16 %v135
    %v284 = vpack.c.b16 %v221, %v220
    %v285 = vpack.c.b16 %v223, %v222
    %v286 = vpack.c.b16 %v225, %v224
    %v287 = vpack.c.b16 %v227, %v226
    %v288 = vpack.c.b16 %v229, %v228
    %v289 = vpack.c.b16 %v231, %v230
    %v290 = vpack.c.b16 %v233, %v232
    %v291 = vpack.c.b16 %v235, %v234
    %v292 = vpack.c.b16 %v237, %v236
    %v293 = vpack.c.b16 %v239, %v238
    %v294 = vpack.c.b16 %v241, %v240
    %v295 = vpack.c.b16 %v243, %v242
    %v296 = vpack.c.b16 %v245, %v244
    %v297 = vpack.c.b16 %v247, %v246
    %v298 = vpack.c.b16 %v249, %v248
    %v299 = vpack.c.b16 %v251, %v250
    %v300 = vpack.c.b16 %v253, %v252
    %v301 = vpack.c.b16 %v255, %v254
    %v302 = vpack.c.b16 %v257, %v256
    %v303 = vpack.c.b16 %v259, %v258
    %v304 = vpack.c.b16 %v261, %v260
    %v305 = vpack.c.b16 %v263, %v262
    %v306 = vpack.c.b16 %v265, %v264
    %v307 = vpack.c.b16 %v267, %v266
    %v308 = vpack.c.b16 %v269, %v268
    %v309 = vpack.c.b16 %v271, %v270
    %v310 = vpack.c.b16 %v273, %v272
    %v311 = vpack.c.b16 %v275, %v274
    %v312 = vpack.c.b16 %v277, %v276
    %v313 = vpack.c.b16 %v279, %v278
    %v314 = vpack.c.b16 %v281, %v280
    %v315 = vpack.c.b16 %v283, %v282
    %348 = vmatprep.subr.bf16.mxu0 0
    %349 = vmatpush1.bf16.msra.mxu0 %v284
    %350 = vmatprep.subr.bf16.mxu0 0
    %351 = vmatpush1.bf16.msra.mxu0 %v285
    %352 = vmatprep.subr.bf16.mxu0 0
    %353 = vmatpush1.bf16.msra.mxu0 %v286
    %354 = vmatprep.subr.bf16.mxu0 0
    %355 = vmatpush1.bf16.msra.mxu0 %v287
    %356 = vmatprep.subr.bf16.mxu0 0
    %357 = vmatpush1.bf16.msra.mxu0 %v288
    %358 = vmatprep.subr.bf16.mxu0 0
    %359 = vmatpush1.bf16.msra.mxu0 %v289
    %360 = vmatprep.subr.bf16.mxu0 0
    %361 = vmatpush1.bf16.msra.mxu0 %v290
    %362 = vmatprep.subr.bf16.mxu0 0
    %363 = vmatpush1.bf16.msra.mxu0 %v291
    %364 = vmatprep.subr.bf16.mxu0 0
    %365 = vmatpush1.bf16.msra.mxu0 %v292
    %366 = vmatprep.subr.bf16.mxu0 0
    %367 = vmatpush1.bf16.msra.mxu0 %v293
    %368 = vmatprep.subr.bf16.mxu0 0
    %369 = vmatpush1.bf16.msra.mxu0 %v294
    %370 = vmatprep.subr.bf16.mxu0 0
    %371 = vmatpush1.bf16.msra.mxu0 %v295
    %372 = vmatprep.subr.bf16.mxu0 0
    %373 = vmatpush1.bf16.msra.mxu0 %v296
    %374 = vmatprep.subr.bf16.mxu0 0
    %375 = vmatpush1.bf16.msra.mxu0 %v297
    %376 = vmatprep.subr.bf16.mxu0 0
    %377 = vmatpush1.bf16.msra.mxu0 %v298
    %378 = vmatprep.subr.bf16.mxu0 0
    %379 = vmatpush1.bf16.msra.mxu0 %v299
    %380 = vmatprep.mubr.bf16.mxu0 %v149
    %381 = vmatmul.mubr.bf16.gmra.mrb[0].mxu0 %v148
    %v382 = vpop.f32.mrb[0].mxu0
    %v383 = vadd.f32 0.0, %v382
    %v384 = vpop.f32.mrb[0].mxu0
    %v385 = vpop.f32.mrb[0].mxu0
    %v386 = vadd.f32 0.0, %v385
    %v387 = vpop.f32.mrb[0].mxu0
    %388 = vdwg.mxu0
    %389 = vmatprep.subr.bf16.mxu0 0
    %390 = vmatpush1.bf16.msra.mxu0 %v300
    %391 = vmatprep.subr.bf16.mxu0 0
    %392 = vmatpush1.bf16.msra.mxu0 %v301
    %393 = vmatprep.subr.bf16.mxu0 0
    %394 = vmatpush1.bf16.msra.mxu0 %v302
    %395 = vmatprep.subr.bf16.mxu0 0
    %396 = vmatpush1.bf16.msra.mxu0 %v303
    %397 = vmatprep.subr.bf16.mxu0 0
    %398 = vmatpush1.bf16.msra.mxu0 %v304
    %399 = vmatprep.subr.bf16.mxu0 0
    %400 = vmatpush1.bf16.msra.mxu0 %v305
    %401 = vmatprep.subr.bf16.mxu0 0
    %402 = vmatpush1.bf16.msra.mxu0 %v306
    %403 = vmatprep.subr.bf16.mxu0 0
    %404 = vmatpush1.bf16.msra.mxu0 %v307
    %405 = vmatprep.subr.bf16.mxu0 0
    %406 = vmatpush1.bf16.msra.mxu0 %v308
    %407 = vmatprep.subr.bf16.mxu0 0
    %408 = vmatpush1.bf16.msra.mxu0 %v309
    %409 = vmatprep.subr.bf16.mxu0 0
    %410 = vmatpush1.bf16.msra.mxu0 %v310
    %411 = vmatprep.subr.bf16.mxu0 0
    %412 = vmatpush1.bf16.msra.mxu0 %v311
    %413 = vmatprep.subr.bf16.mxu0 0
    %414 = vmatpush1.bf16.msra.mxu0 %v312
    %415 = vmatprep.subr.bf16.mxu0 0
    %416 = vmatpush1.bf16.msra.mxu0 %v313
    %417 = vmatprep.subr.bf16.mxu0 0
    %418 = vmatpush1.bf16.msra.mxu0 %v314
    %419 = vmatprep.subr.bf16.mxu0 0
    %420 = vmatpush1.bf16.msra.mxu0 %v315
    %421 = vmatprep.mubr.bf16.mxu0 %v151
    %422 = vmatmul.mubr.bf16.gmra.mrb[0].mxu0 %v150
    %v423 = vpop.f32.mrb[0].mxu0
    %v424 = vadd.f32 %v383, %v423
    %v425 = vpop.f32.mrb[0].mxu0
    %v426 = vpop.f32.mrb[0].mxu0
    %v427 = vadd.f32 %v386, %v426
    %v428 = vpop.f32.mrb[0].mxu0
    %429 = vdwg.mxu0
    %v430 = vadd.f32 %v66, %v424
    %v431 = vadd.f32 %v67, %v427
    %432 = vst [vmem:[#allocation2] sm:$0xff] %v430
    %433 = vst [vmem:[#allocation2 + $0x8] sm:$0xff] %v431
    // Predicated region
    $region34: #{tpu_custom_call.1} parent=1 // pred_check
      %p434 = pneg %p60
    $region35: #{tpu_custom_call.1} parent=1 // pred_check_branch
      %436 = sbr.rel (%p434) target = $region37
    $region36: #{tpu_custom_call.1} parent=1 // pred_region
      %v437 = vld [vmem:[%s3] sm:$0x1]
      %v438 = vld [vmem:[%s3 + $0x1] sm:$0x1]
      %v439 = vld [vmem:[%s3 + $0x2] sm:$0x1]
      %v440 = vld [vmem:[#allocation2] sm:$0xff]
      %v441 = vld [vmem:[#allocation2 + $0x8] sm:$0xff]
      %v442 = vlaneseq
      %v443 = vshrl.u32 %v442, 7
      %v444 = vsub.s32 0, %v443
      %v445 = vrot.slane %v437, %v444
      %v446 = vadd.f32 %v440, %v445
      %v447 = vadd.f32 %v441, %v445
      %v448 = vld [vmem:[#allocation6] sm:$0xf]
      %v449 = vld [vmem:[#allocation6 + $0x4] sm:$0xf]
      %v450 = vunpack.c.l.bf16 %v448
      %v451 = vunpack.c.l.bf16 %v449
      %v452 = vadd.f32 %v446, %v450
      %v453 = vadd.f32 %v447, %v451
      %454 = vadd.xlane.f32.xlu0 %v452
      %v455 = vpop.xlane.xlu0 %454
      %456 = vadd.xlane.f32.xlu0 %v453
      %v457 = vpop.xlane.xlu0 %456
      %v458 = vrcp.pop 128.0
      %v459 = vmul.f32 %v455, %v458
      %v460 = vmul.f32 %v457, %v458
      %v461 = vsub.f32 %v452, %v459
      %v462 = vsub.f32 %v453, %v460
      %v463 = vmul.f32 %v461, %v461
      %v464 = vmul.f32 %v462, %v462
      %465 = vadd.xlane.f32.xlu0 %v463
      %v466 = vpop.xlane.xlu0 %465
      %467 = vadd.xlane.f32.xlu0 %v464
      %v468 = vpop.xlane.xlu0 %467
      %v469 = vmul.f32 %v466, %v458
      %v470 = vmul.f32 %v468, %v458
      %v471 = vadd.f32 %v469, 1e-12
      %v472 = vadd.f32 %v470, 1e-12
      %v473 = vrsqrt.pop %v471
      %v474 = vrsqrt.pop %v472
      %v475 = vmul.f32 %v461, %v473
      %v476 = vmul.f32 %v462, %v474
      %v477 = vlaneseq
      %v478 = vshrl.u32 %v477, 7
      %v479 = vsub.s32 0, %v478
      %v480 = vrot.slane %v438, %v479
      %v481 = vmul.f32 %v480, %v475
      %v482 = vmul.f32 %v480, %v476
      %v483 = vlaneseq
      %v484 = vshrl.u32 %v483, 7
      %v485 = vsub.s32 0, %v484
      %v486 = vrot.slane %v439, %v485
      %v487 = vadd.f32 %v481, %v486
      %v488 = vadd.f32 %v482, %v486
      %489 = vst [vmem:[#allocation9] sm:$0xff] %v487
      %490 = vst [vmem:[#allocation9 + $0x8] sm:$0xff] %v488
    $region37: #{tpu_custom_call.1} parent=1 // pred_fallthru
      _
    // Predicated region
    $region38: #{tpu_custom_call.1} parent=1 // pred_check
      _
    $region39: #{tpu_custom_call.1} parent=1 // pred_check_branch
      %492 = sbr.rel (0) target = $region41
    $region40: #{tpu_custom_call.1} parent=1 // pred_region
      %s494 = ssub.s32 256, 256
      %495 = vsyncadd [#allocation5], %s494
      %s496 = sshll.u32 [#allocation9], 4
      %s497 = int_to_ptr.vmem [resolvable:$true] %s496
      %502 = dma.vmem_to_hbm [thread:$0]  %s497, 256, %s4, [#allocation5], 128, 128, 8
    $region41: #{tpu_custom_call.1} parent=1 // pred_fallthru
      _
    // Predicated region
    $region42: #{tpu_custom_call.1} parent=1 // pred_check
      _
    $region43: #{tpu_custom_call.1} parent=1 // pred_check_branch
      %504 = sbr.rel (0) target = $region45
    $region44: #{tpu_custom_call.1} parent=1 // pred_region
      %505 = dma.done [#allocation5], 256
    $region45: #{tpu_custom_call.1} parent=1 // pred_fallthru
      _
    %506 = vsyncpa [#allocation4], 1
    %507 = vsyncpa [#allocation7], 1
    %508 = vsyncpa [#allocation5], 1

</llo_original>
